<compile_context>
chip_gen: v5e
topology: v5e:2x2
jax: 0.10.0
libtpu: 0.0.40
codegen_flags: <defaults>
</compile_context>

<pallas_src>
import jax
import jax.numpy as jnp
from jax.experimental import pallas as pl
from jax.experimental.pallas import tpu as pltpu

_LANE = 128
_SUBLANE = 8


def _fused_gcn_kernel(x_ref, adj_ref, w1_ref, b1_ref, w2_ref, b2_ref,
                      w3_ref, b3_ref, o_ref):
    """Entire forward pass, all operands resident in VMEM.

    h1  = relu( adj @ (x  @ w1) + b1 )     # GCNConv(16,32) + ReLU
    h2  = relu( adj @ (h1 @ w2) + b2 )     # GCNConv(32,16) + ReLU
    out =        h2 @ w3 + b3              # Linear(16, 4) (lane-padded to 128)
    """
    adj = adj_ref[...]

    h = jnp.dot(x_ref[...], w1_ref[...], preferred_element_type=jnp.float32)
    h = jnp.dot(adj, h, preferred_element_type=jnp.float32) + b1_ref[...]
    h = jnp.maximum(h, 0.0)

    h = jnp.dot(h, w2_ref[...], preferred_element_type=jnp.float32)
    h = jnp.dot(adj, h, preferred_element_type=jnp.float32) + b2_ref[...]
    h = jnp.maximum(h, 0.0)

    out = jnp.dot(h, w3_ref[...], preferred_element_type=jnp.float32)
    out = out + b3_ref[...]
    o_ref[...] = out.astype(o_ref.dtype)


def gcn_forward(x, adj_norm, params):
    """Mirrors GraphConvoNetwork.forward(): GCNConv+ReLU, GCNConv+ReLU, Linear."""
    (w1, b1), (w2, b2), (w3, b3) = params
    n = x.shape[0]
    out_dim = w3.shape[1]

    # Pad node count to a sublane multiple (robust for N not divisible by 8).
    n_pad = (-n) % _SUBLANE
    if n_pad:
        x = jnp.pad(x, ((0, n_pad), (0, 0)))
        adj_norm = jnp.pad(adj_norm, ((0, n_pad), (0, n_pad)))
    n_p = n + n_pad

    # Lane-dense output: pad the final layer to 128 output lanes (zero columns
    # of W3/b3), slice back in the wrapper.  Avoids masked partial stores.
    out_pad = (-out_dim) % _LANE
    w3p = jnp.pad(w3, ((0, 0), (0, out_pad)))
    b3p = jnp.pad(b3.reshape(1, -1), ((0, 0), (0, out_pad)))

    vmem = pl.BlockSpec(memory_space=pltpu.MemorySpace.VMEM)
    out_padded = pl.pallas_call(
        _fused_gcn_kernel,
        out_shape=jax.ShapeDtypeStruct((n_p, out_dim + out_pad), jnp.float32),
        in_specs=[vmem] * 8,
        out_specs=vmem,
    )(x, adj_norm,
      w1, b1.reshape(1, -1),
      w2, b2.reshape(1, -1),
      w3p, b3p)

    return out_padded[:n, :out_dim]


def _reference_forward(x, adj_norm, params):
    (w1, b1), (w2, b2), (w3, b3) = params
    h = jnp.maximum(adj_norm @ (x @ w1) + b1, 0.0)
    h = jnp.maximum(adj_norm @ (h @ w2) + b2, 0.0)
    return h @ w3 + b3


if __name__ == "__main__":
    N, F_IN, HID1, HID2, OUT = 128, 16, 32, 16, 4

    key = jax.random.PRNGKey(0)
    k_x, k_adj, k_w1, k_w2, k_w3 = jax.random.split(key, 5)

    # Node features (what loadData() would read from file).
    x = jax.random.normal(k_x, (N, F_IN), dtype=jnp.float32)

    # Deterministic random undirected graph; GCN-normalized dense adjacency
    # D^{-1/2} (A + I) D^{-1/2}  (plain-JAX glue, built once).
    probs = jax.random.uniform(k_adj, (N, N))
    a = (probs < 0.05).astype(jnp.float32)
    a = jnp.maximum(a, a.T)                           # undirected
    a = a * (1.0 - jnp.eye(N, dtype=jnp.float32))
    a_hat = a + jnp.eye(N, dtype=jnp.float32)         # self loops
    deg = a_hat.sum(axis=1)
    d_inv_sqrt = jax.lax.rsqrt(deg)
    adj_norm = a_hat * d_inv_sqrt[:, None] * d_inv_sqrt[None, :]

    # Deterministic parameter init (glorot-uniform, zero bias).
    def glorot(k, fan_in, fan_out):
        lim = jnp.sqrt(6.0 / (fan_in + fan_out))
        return jax.random.uniform(k, (fan_in, fan_out), jnp.float32, -lim, lim)

    params = (
        (glorot(k_w1, F_IN, HID1), jnp.zeros((HID1,), jnp.float32)),
        (glorot(k_w2, HID1, HID2), jnp.zeros((HID2,), jnp.float32)),
        (glorot(k_w3, HID2, OUT), jnp.zeros((OUT,), jnp.float32)),
    )

    out = gcn_forward(x, adj_norm, params)
    out = jax.block_until_ready(out)

    ref = _reference_forward(x, adj_norm, params)
    assert out.shape == (N, OUT), out.shape
    assert jnp.allclose(out, ref, atol=1e-4, rtol=1e-4), "mismatch vs reference"

    print("KERNEL_OK")
</pallas_src>

<mosaic_0001>
module attributes {stable_mosaic.version = 11 : i64} {
  func.func @_fused_gcn_kernel(%arg0: memref<128x16xf32, #tpu.memory_space<vmem>>, %arg1: memref<128x128xf32, #tpu.memory_space<vmem>>, %arg2: memref<16x32xf32, #tpu.memory_space<vmem>>, %arg3: memref<1x32xf32, #tpu.memory_space<vmem>>, %arg4: memref<32x16xf32, #tpu.memory_space<vmem>>, %arg5: memref<1x16xf32, #tpu.memory_space<vmem>>, %arg6: memref<16x128xf32, #tpu.memory_space<vmem>>, %arg7: memref<1x128xf32, #tpu.memory_space<vmem>>, %arg8: memref<128x128xf32, #tpu.memory_space<vmem>>) attributes {dimension_semantics = [], scalar_prefetch = 0 : i64, scratch_operands = 0 : i64, tpu.core_type = #tpu.core_type<tc>} {
    %c0 = arith.constant 0 : index
    %c0_0 = arith.constant 0 : index
    %0 = vector.load %arg1[%c0, %c0_0] : memref<128x128xf32, #tpu.memory_space<vmem>>, vector<128x128xf32>
    %c0_1 = arith.constant 0 : index
    %c0_2 = arith.constant 0 : index
    %1 = vector.load %arg0[%c0_1, %c0_2] : memref<128x16xf32, #tpu.memory_space<vmem>>, vector<128x16xf32>
    %c0_3 = arith.constant 0 : index
    %c0_4 = arith.constant 0 : index
    %2 = vector.load %arg2[%c0_3, %c0_4] : memref<16x32xf32, #tpu.memory_space<vmem>>, vector<16x32xf32>
    %cst = arith.constant dense<0.000000e+00> : vector<128x32xf32>
    %3 = tpu.matmul %1, %2, %cst {dimension_numbers = #tpu.dot_dimension_numbers<[1], [0], [0], [1], [0, 0, 1, 1], [], []>} : vector<128x16xf32>, vector<16x32xf32>, vector<128x32xf32> -> vector<128x32xf32>
    %cst_5 = arith.constant dense<0.000000e+00> : vector<128x32xf32>
    %4 = tpu.matmul %0, %3, %cst_5 {dimension_numbers = #tpu.dot_dimension_numbers<[1], [0], [0], [1], [0, 0, 1, 1], [], []>} : vector<128x128xf32>, vector<128x32xf32>, vector<128x32xf32> -> vector<128x32xf32>
    %c0_6 = arith.constant 0 : index
    %c0_7 = arith.constant 0 : index
    %5 = vector.load %arg3[%c0_6, %c0_7] : memref<1x32xf32, #tpu.memory_space<vmem>>, vector<1x32xf32>
    %6 = vector.broadcast %5 : vector<1x32xf32> to vector<128x32xf32>
    %7 = arith.addf %4, %6 : vector<128x32xf32>
    %cst_8 = arith.constant 0.000000e+00 : f32
    %8 = vector.broadcast %cst_8 : f32 to vector<128x32xf32>
    %9 = arith.maximumf %7, %8 : vector<128x32xf32>
    %c0_9 = arith.constant 0 : index
    %c0_10 = arith.constant 0 : index
    %10 = vector.load %arg4[%c0_9, %c0_10] : memref<32x16xf32, #tpu.memory_space<vmem>>, vector<32x16xf32>
    %cst_11 = arith.constant dense<0.000000e+00> : vector<128x16xf32>
    %11 = tpu.matmul %9, %10, %cst_11 {dimension_numbers = #tpu.dot_dimension_numbers<[1], [0], [0], [1], [0, 0, 1, 1], [], []>} : vector<128x32xf32>, vector<32x16xf32>, vector<128x16xf32> -> vector<128x16xf32>
    %cst_12 = arith.constant dense<0.000000e+00> : vector<128x16xf32>
    %12 = tpu.matmul %0, %11, %cst_12 {dimension_numbers = #tpu.dot_dimension_numbers<[1], [0], [0], [1], [0, 0, 1, 1], [], []>} : vector<128x128xf32>, vector<128x16xf32>, vector<128x16xf32> -> vector<128x16xf32>
    %c0_13 = arith.constant 0 : index
    %c0_14 = arith.constant 0 : index
    %13 = vector.load %arg5[%c0_13, %c0_14] : memref<1x16xf32, #tpu.memory_space<vmem>>, vector<1x16xf32>
    %14 = vector.broadcast %13 : vector<1x16xf32> to vector<128x16xf32>
    %15 = arith.addf %12, %14 : vector<128x16xf32>
    %cst_15 = arith.constant 0.000000e+00 : f32
    %16 = vector.broadcast %cst_15 : f32 to vector<128x16xf32>
    %17 = arith.maximumf %15, %16 : vector<128x16xf32>
    %c0_16 = arith.constant 0 : index
    %c0_17 = arith.constant 0 : index
    %18 = vector.load %arg6[%c0_16, %c0_17] : memref<16x128xf32, #tpu.memory_space<vmem>>, vector<16x128xf32>
    %cst_18 = arith.constant dense<0.000000e+00> : vector<128x128xf32>
    %19 = tpu.matmul %17, %18, %cst_18 {dimension_numbers = #tpu.dot_dimension_numbers<[1], [0], [0], [1], [0, 0, 1, 1], [], []>} : vector<128x16xf32>, vector<16x128xf32>, vector<128x128xf32> -> vector<128x128xf32>
    %c0_19 = arith.constant 0 : index
    %c0_20 = arith.constant 0 : index
    %20 = vector.load %arg7[%c0_19, %c0_20] : memref<1x128xf32, #tpu.memory_space<vmem>>, vector<1x128xf32>
    %21 = vector.broadcast %20 : vector<1x128xf32> to vector<128x128xf32>
    %22 = arith.addf %19, %21 : vector<128x128xf32>
    %c0_21 = arith.constant 0 : index
    %c0_22 = arith.constant 0 : index
    %23 = vector.load %arg8[%c0_21, %c0_22] : memref<128x128xf32, #tpu.memory_space<vmem>>, vector<128x128xf32>
    tpu.vector_store %arg8[%c0_21, %c0_22], %22 {strides = array<i32>} : memref<128x128xf32, #tpu.memory_space<vmem>>, vector<128x128xf32>,
    return
  }
}

</mosaic_0001>

<llo_original>
// kernel: tpu_custom_call.1
$region0: #{tpu_custom_call.1}
  #allocation0 [shape = 'u32[]', space=smem, size = 0x4, offset = 0x4, fixed_abs, tag = 'smem constant byte address 0x4 - core index']
  #allocation1 [shape = 'u32[72,128]{1,0:T(1,128)}', space=vmem, size = 0x9000, scoped, tag = 'internal scratch']
  %s0 = inlined_call_operand.vmem [shape: f32[128,16], index: 0, kind: input, shape index: {}]
  %s1 = inlined_call_operand.vmem [shape: f32[128,128], index: 1, kind: input, shape index: {}]
  %s2 = inlined_call_operand.vmem [shape: f32[16,32], index: 2, kind: input, shape index: {}]
  %s3 = inlined_call_operand.vmem [shape: f32[1,32], index: 3, kind: input, shape index: {}]
  %s4 = inlined_call_operand.vmem [shape: f32[32,16], index: 4, kind: input, shape index: {}]
  %s5 = inlined_call_operand.vmem [shape: f32[1,16], index: 5, kind: input, shape index: {}]
  %s6 = inlined_call_operand.vmem [shape: f32[16,128], index: 6, kind: input, shape index: {}]
  %s7 = inlined_call_operand.vmem [shape: f32[1,128], index: 7, kind: input, shape index: {}]
  %s8 = inlined_call_operand.hbm [shape: f32[128,128], index: 8, kind: output, shape index: {}]
  %s9 = sld [smem:[#allocation0]]
  $region42: #{tpu_custom_call.1} parent=0
    _
  %s11 = ssub.s32 1, %s9
  %s12 = scalar_select 0, %s11, %s9
  $region1: #{tpu_custom_call.1} parent=0
    #allocation2 [shape = 'u8[65536]{0}', space=vmem, size = 0x10000, scoped, tag = 'output window, operand 0, single buffered']
    #allocation3 [shape = 's32[1]{0}', space=sflag, size = 0x4, scoped, tag = 'scoped memory for tpu_custom_call.1']
    %13 = vsyncpa [#allocation3], 0
    // Predicated region
    $region2: #{tpu_custom_call.1} parent=1 // pred_check
      _
    $region3: #{tpu_custom_call.1} parent=1 // pred_check_branch
      %15 = sbr.rel (0) target = $region5
    $region4: #{tpu_custom_call.1} parent=1 // pred_region
      _
    $region5: #{tpu_custom_call.1} parent=1 // pred_fallthru
      _
    // Predicated region
    $region6: #{tpu_custom_call.1} parent=1 // pred_check
      _
    $region7: #{tpu_custom_call.1} parent=1 // pred_check_branch
      %17 = sbr.rel (0) target = $region9
    $region8: #{tpu_custom_call.1} parent=1 // pred_region
      _
    $region9: #{tpu_custom_call.1} parent=1 // pred_fallthru
      _
    // Predicated region
    $region10: #{tpu_custom_call.1} parent=1 // pred_check
      _
    $region11: #{tpu_custom_call.1} parent=1 // pred_check_branch
      %19 = sbr.rel (0) target = $region13
    $region12: #{tpu_custom_call.1} parent=1 // pred_region
      _
    $region13: #{tpu_custom_call.1} parent=1 // pred_fallthru
      _
    // Predicated region
    $region14: #{tpu_custom_call.1} parent=1 // pred_check
      _
    $region15: #{tpu_custom_call.1} parent=1 // pred_check_branch
      %21 = sbr.rel (0) target = $region17
    $region16: #{tpu_custom_call.1} parent=1 // pred_region
      _
    $region17: #{tpu_custom_call.1} parent=1 // pred_fallthru
      _
    // Predicated region
    $region18: #{tpu_custom_call.1} parent=1 // pred_check
      _
    $region19: #{tpu_custom_call.1} parent=1 // pred_check_branch
      %23 = sbr.rel (0) target = $region21
    $region20: #{tpu_custom_call.1} parent=1 // pred_region
      _
    $region21: #{tpu_custom_call.1} parent=1 // pred_fallthru
      _
    // Predicated region
    $region22: #{tpu_custom_call.1} parent=1 // pred_check
      _
    $region23: #{tpu_custom_call.1} parent=1 // pred_check_branch
      %25 = sbr.rel (0) target = $region25
    $region24: #{tpu_custom_call.1} parent=1 // pred_region
      _
    $region25: #{tpu_custom_call.1} parent=1 // pred_fallthru
      _
    // Predicated region
    $region26: #{tpu_custom_call.1} parent=1 // pred_check
      _
    $region27: #{tpu_custom_call.1} parent=1 // pred_check_branch
      %27 = sbr.rel (0) target = $region29
    $region28: #{tpu_custom_call.1} parent=1 // pred_region
      _
    $region29: #{tpu_custom_call.1} parent=1 // pred_fallthru
      _
    // Predicated region
    $region30: #{tpu_custom_call.1} parent=1 // pred_check
      _
    $region31: #{tpu_custom_call.1} parent=1 // pred_check_branch
      %29 = sbr.rel (0) target = $region33
    $region32: #{tpu_custom_call.1} parent=1 // pred_region
      _
    $region33: #{tpu_custom_call.1} parent=1 // pred_fallthru
      _
    %v30 = vld [vmem:[%s1] sm:$0xff]
    %v31 = vld [vmem:[%s1 + $0x8] sm:$0xff]
    %v32 = vld [vmem:[%s1 + $0x10] sm:$0xff]
    %v33 = vld [vmem:[%s1 + $0x18] sm:$0xff]
    %v34 = vld [vmem:[%s1 + $0x20] sm:$0xff]
    %v35 = vld [vmem:[%s1 + $0x28] sm:$0xff]
    %v36 = vld [vmem:[%s1 + $0x30] sm:$0xff]
    %v37 = vld [vmem:[%s1 + $0x38] sm:$0xff]
    %v38 = vld [vmem:[%s1 + $0x40] sm:$0xff]
    %v39 = vld [vmem:[%s1 + $0x48] sm:$0xff]
    %v40 = vld [vmem:[%s1 + $0x50] sm:$0xff]
    %v41 = vld [vmem:[%s1 + $0x58] sm:$0xff]
    %v42 = vld [vmem:[%s1 + $0x60] sm:$0xff]
    %v43 = vld [vmem:[%s1 + $0x68] sm:$0xff]
    %v44 = vld [vmem:[%s1 + $0x70] sm:$0xff]
    %v45 = vld [vmem:[%s1 + $0x78] sm:$0xff]
    %v46 = vld [vmem:[%s0] sm:$0xff]
    %v47 = vld [vmem:[%s0 + $0x8] sm:$0xff]
    %v48 = vld [vmem:[%s0 + $0x10] sm:$0xff]
    %v49 = vld [vmem:[%s0 + $0x18] sm:$0xff]
    %v50 = vld [vmem:[%s0 + $0x20] sm:$0xff]
    %v51 = vld [vmem:[%s0 + $0x28] sm:$0xff]
    %v52 = vld [vmem:[%s0 + $0x30] sm:$0xff]
    %v53 = vld [vmem:[%s0 + $0x38] sm:$0xff]
    %v54 = vld [vmem:[%s0 + $0x40] sm:$0xff]
    %v55 = vld [vmem:[%s0 + $0x48] sm:$0xff]
    %v56 = vld [vmem:[%s0 + $0x50] sm:$0xff]
    %v57 = vld [vmem:[%s0 + $0x58] sm:$0xff]
    %v58 = vld [vmem:[%s0 + $0x60] sm:$0xff]
    %v59 = vld [vmem:[%s0 + $0x68] sm:$0xff]
    %v60 = vld [vmem:[%s0 + $0x70] sm:$0xff]
    %v61 = vld [vmem:[%s0 + $0x78] sm:$0xff]
    %v62 = vld [vmem:[%s2] sm:$0xff]
    %v63 = vld [vmem:[%s2 + $0x8] sm:$0xff]
    %vm64 = vcmask 130048
    %v66 = vsel %vm64, %v46, 0
    %v69 = vsel %vm64, %v47, 0
    %v72 = vsel %vm64, %v48, 0
    %v75 = vsel %vm64, %v49, 0
    %v78 = vsel %vm64, %v50, 0
    %v81 = vsel %vm64, %v51, 0
    %v84 = vsel %vm64, %v52, 0
    %v87 = vsel %vm64, %v53, 0
    %v90 = vsel %vm64, %v54, 0
    %v93 = vsel %vm64, %v55, 0
    %v96 = vsel %vm64, %v56, 0
    %v99 = vsel %vm64, %v57, 0
    %v102 = vsel %vm64, %v58, 0
    %v105 = vsel %vm64, %v59, 0
    %v108 = vsel %vm64, %v60, 0
    %v111 = vsel %vm64, %v61, 0
    %113 = vmatpush.msra.mxu0 0.0
    %114 = vmatpush.msra.mxu0 0.0
    %115 = vmatpush.msra.mxu0 0.0
    %116 = vmatpush.msra.mxu0 0.0
    %117 = vmatpush.msra.mxu0 0.0
    %118 = vmatpush.msra.mxu0 0.0
    %119 = vmatpush.msra.mxu0 0.0
    %120 = vmatpush.msra.mxu0 0.0
    %121 = vmatpush.msra.mxu0 0.0
    %122 = vmatpush.msra.mxu0 0.0
    %123 = vmatpush.msra.mxu0 0.0
    %124 = vmatpush.msra.mxu0 0.0
    %125 = vmatpush.msra.mxu0 0.0
    %126 = vmatpush.msra.mxu0 0.0
    %127 = vmatpush.msra.mxu0 %v63
    %128 = vmatpush.msra.mxu0 %v62
    %129 = vmatmul.f32.gmra.mxu0 %v66
    %v130 = vpop.f32.mrf.mxu0
    %v131 = vadd.f32 0.0, %v130
    %132 = vmatmul.f32.gmra.mxu0 %v69
    %v133 = vpop.f32.mrf.mxu0
    %v134 = vadd.f32 0.0, %v133
    %135 = vmatmul.f32.gmra.mxu0 %v72
    %v136 = vpop.f32.mrf.mxu0
    %v137 = vadd.f32 0.0, %v136
    %138 = vmatmul.f32.gmra.mxu0 %v75
    %v139 = vpop.f32.mrf.mxu0
    %v140 = vadd.f32 0.0, %v139
    %141 = vmatmul.f32.gmra.mxu0 %v78
    %v142 = vpop.f32.mrf.mxu0
    %v143 = vadd.f32 0.0, %v142
    %144 = vmatmul.f32.gmra.mxu0 %v81
    %v145 = vpop.f32.mrf.mxu0
    %v146 = vadd.f32 0.0, %v145
    %147 = vmatmul.f32.gmra.mxu0 %v84
    %v148 = vpop.f32.mrf.mxu0
    %v149 = vadd.f32 0.0, %v148
    %150 = vmatmul.f32.gmra.mxu0 %v87
    %v151 = vpop.f32.mrf.mxu0
    %v152 = vadd.f32 0.0, %v151
    %153 = vmatmul.f32.gmra.mxu0 %v90
    %v154 = vpop.f32.mrf.mxu0
    %v155 = vadd.f32 0.0, %v154
    %156 = vmatmul.f32.gmra.mxu0 %v93
    %v157 = vpop.f32.mrf.mxu0
    %v158 = vadd.f32 0.0, %v157
    %159 = vmatmul.f32.gmra.mxu0 %v96
    %v160 = vpop.f32.mrf.mxu0
    %v161 = vadd.f32 0.0, %v160
    %162 = vmatmul.f32.gmra.mxu0 %v99
    %v163 = vpop.f32.mrf.mxu0
    %v164 = vadd.f32 0.0, %v163
    %165 = vmatmul.f32.gmra.mxu0 %v102
    %v166 = vpop.f32.mrf.mxu0
    %v167 = vadd.f32 0.0, %v166
    %168 = vmatmul.f32.gmra.mxu0 %v105
    %v169 = vpop.f32.mrf.mxu0
    %v170 = vadd.f32 0.0, %v169
    %171 = vmatmul.f32.gmra.mxu0 %v108
    %v172 = vpop.f32.mrf.mxu0
    %v173 = vadd.f32 0.0, %v172
    %174 = vmatmul.f32.gmra.mxu0 %v111
    %v175 = vpop.f32.mrf.mxu0
    %v176 = vadd.f32 0.0, %v175
    %177 = vdwg.mxu0
    %v178 = vld [vmem:[%s3] sm:$0x1]
    %v180 = vperm.slane %v178, 0
    %182 = vmatpush.msra.mxu0 %v176
    %183 = vmatpush.msra.mxu0 %v173
    %184 = vmatpush.msra.mxu0 %v170
    %185 = vmatpush.msra.mxu0 %v167
    %186 = vmatpush.msra.mxu0 %v164
    %187 = vmatpush.msra.mxu0 %v161
    %188 = vmatpush.msra.mxu0 %v158
    %189 = vmatpush.msra.mxu0 %v155
    %190 = vmatpush.msra.mxu0 %v152
    %191 = vmatpush.msra.mxu0 %v149
    %192 = vmatpush.msra.mxu0 %v146
    %193 = vmatpush.msra.mxu0 %v143
    %194 = vmatpush.msra.mxu0 %v140
    %195 = vmatpush.msra.mxu0 %v137
    %196 = vmatpush.msra.mxu0 %v134
    %197 = vmatpush.msra.mxu0 %v131
    %198 = vmatmul.f32.gmra.mxu0 %v30
    %v199 = vpop.f32.mrf.mxu0
    %v200 = vadd.f32 %v180, %v199
    %201 = vmatmul.f32.gmra.mxu0 %v31
    %v202 = vpop.f32.mrf.mxu0
    %v203 = vadd.f32 %v180, %v202
    %204 = vmatmul.f32.gmra.mxu0 %v32
    %v205 = vpop.f32.mrf.mxu0
    %v206 = vadd.f32 %v180, %v205
    %207 = vmatmul.f32.gmra.mxu0 %v33
    %v208 = vpop.f32.mrf.mxu0
    %v209 = vadd.f32 %v180, %v208
    %210 = vmatmul.f32.gmra.mxu0 %v34
    %v211 = vpop.f32.mrf.mxu0
    %v212 = vadd.f32 %v180, %v211
    %213 = vmatmul.f32.gmra.mxu0 %v35
    %v214 = vpop.f32.mrf.mxu0
    %v215 = vadd.f32 %v180, %v214
    %216 = vmatmul.f32.gmra.mxu0 %v36
    %v217 = vpop.f32.mrf.mxu0
    %v218 = vadd.f32 %v180, %v217
    %219 = vmatmul.f32.gmra.mxu0 %v37
    %v220 = vpop.f32.mrf.mxu0
    %v221 = vadd.f32 %v180, %v220
    %222 = vmatmul.f32.gmra.mxu0 %v38
    %v223 = vpop.f32.mrf.mxu0
    %v224 = vadd.f32 %v180, %v223
    %225 = vmatmul.f32.gmra.mxu0 %v39
    %v226 = vpop.f32.mrf.mxu0
    %v227 = vadd.f32 %v180, %v226
    %228 = vmatmul.f32.gmra.mxu0 %v40
    %v229 = vpop.f32.mrf.mxu0
    %v230 = vadd.f32 %v180, %v229
    %231 = vmatmul.f32.gmra.mxu0 %v41
    %v232 = vpop.f32.mrf.mxu0
    %v233 = vadd.f32 %v180, %v232
    %234 = vmatmul.f32.gmra.mxu0 %v42
    %v235 = vpop.f32.mrf.mxu0
    %v236 = vadd.f32 %v180, %v235
    %237 = vmatmul.f32.gmra.mxu0 %v43
    %v238 = vpop.f32.mrf.mxu0
    %v239 = vadd.f32 %v180, %v238
    %240 = vmatmul.f32.gmra.mxu0 %v44
    %v241 = vpop.f32.mrf.mxu0
    %v242 = vadd.f32 %v180, %v241
    %243 = vmatmul.f32.gmra.mxu0 %v45
    %v244 = vpop.f32.mrf.mxu0
    %v245 = vadd.f32 %v180, %v244
    %246 = vdwg.mxu0
    %v247 = vmax.f32 %v200, 0.0
    %v248 = vmax.f32 %v203, 0.0
    %v249 = vmax.f32 %v206, 0.0
    %v250 = vmax.f32 %v209, 0.0
    %v251 = vmax.f32 %v212, 0.0
    %v252 = vmax.f32 %v215, 0.0
    %v253 = vmax.f32 %v218, 0.0
    %v254 = vmax.f32 %v221, 0.0
    %v255 = vmax.f32 %v224, 0.0
    %v256 = vmax.f32 %v227, 0.0
    %v257 = vmax.f32 %v230, 0.0
    %v258 = vmax.f32 %v233, 0.0
    %v259 = vmax.f32 %v236, 0.0
    %v260 = vmax.f32 %v239, 0.0
    %v261 = vmax.f32 %v242, 0.0
    %v262 = vmax.f32 %v245, 0.0
    %v263 = vld [vmem:[%s4] sm:$0xff]
    %v264 = vld [vmem:[%s4 + $0x8] sm:$0xff]
    %v265 = vld [vmem:[%s4 + $0x10] sm:$0xff]
    %v266 = vld [vmem:[%s4 + $0x18] sm:$0xff]
    %vm267 = vcmask 261120
    %v269 = vsel %vm267, %v247, 0
    %v272 = vsel %vm267, %v248, 0
    %v275 = vsel %vm267, %v249, 0
    %v278 = vsel %vm267, %v250, 0
    %v281 = vsel %vm267, %v251, 0
    %v284 = vsel %vm267, %v252, 0
    %v287 = vsel %vm267, %v253, 0
    %v290 = vsel %vm267, %v254, 0
    %v293 = vsel %vm267, %v255, 0
    %v296 = vsel %vm267, %v256, 0
    %v299 = vsel %vm267, %v257, 0
    %v302 = vsel %vm267, %v258, 0
    %v305 = vsel %vm267, %v259, 0
    %v308 = vsel %vm267, %v260, 0
    %v311 = vsel %vm267, %v261, 0
    %v314 = vsel %vm267, %v262, 0
    %316 = vmatpush.msra.mxu0 0.0
    %317 = vmatpush.msra.mxu0 0.0
    %318 = vmatpush.msra.mxu0 0.0
    %319 = vmatpush.msra.mxu0 0.0
    %320 = vmatpush.msra.mxu0 0.0
    %321 = vmatpush.msra.mxu0 0.0
    %322 = vmatpush.msra.mxu0 0.0
    %323 = vmatpush.msra.mxu0 0.0
    %324 = vmatpush.msra.mxu0 0.0
    %325 = vmatpush.msra.mxu0 0.0
    %326 = vmatpush.msra.mxu0 0.0
    %327 = vmatpush.msra.mxu0 0.0
    %328 = vmatpush.msra.mxu0 %v266
    %329 = vmatpush.msra.mxu0 %v265
    %330 = vmatpush.msra.mxu0 %v264
    %331 = vmatpush.msra.mxu0 %v263
    %332 = vmatmul.f32.gmra.mxu0 %v269
    %v333 = vpop.f32.mrf.mxu0
    %v334 = vadd.f32 0.0, %v333
    %335 = vmatmul.f32.gmra.mxu0 %v272
    %v336 = vpop.f32.mrf.mxu0
    %v337 = vadd.f32 0.0, %v336
    %338 = vmatmul.f32.gmra.mxu0 %v275
    %v339 = vpop.f32.mrf.mxu0
    %v340 = vadd.f32 0.0, %v339
    %341 = vmatmul.f32.gmra.mxu0 %v278
    %v342 = vpop.f32.mrf.mxu0
    %v343 = vadd.f32 0.0, %v342
    %344 = vmatmul.f32.gmra.mxu0 %v281
    %v345 = vpop.f32.mrf.mxu0
    %v346 = vadd.f32 0.0, %v345
    %347 = vmatmul.f32.gmra.mxu0 %v284
    %v348 = vpop.f32.mrf.mxu0
    %v349 = vadd.f32 0.0, %v348
    %350 = vmatmul.f32.gmra.mxu0 %v287
    %v351 = vpop.f32.mrf.mxu0
    %v352 = vadd.f32 0.0, %v351
    %353 = vmatmul.f32.gmra.mxu0 %v290
    %v354 = vpop.f32.mrf.mxu0
    %v355 = vadd.f32 0.0, %v354
    %356 = vmatmul.f32.gmra.mxu0 %v293
    %v357 = vpop.f32.mrf.mxu0
    %v358 = vadd.f32 0.0, %v357
    %359 = vmatmul.f32.gmra.mxu0 %v296
    %v360 = vpop.f32.mrf.mxu0
    %v361 = vadd.f32 0.0, %v360
    %362 = vmatmul.f32.gmra.mxu0 %v299
    %v363 = vpop.f32.mrf.mxu0
    %v364 = vadd.f32 0.0, %v363
    %365 = vmatmul.f32.gmra.mxu0 %v302
    %v366 = vpop.f32.mrf.mxu0
    %v367 = vadd.f32 0.0, %v366
    %368 = vmatmul.f32.gmra.mxu0 %v305
    %v369 = vpop.f32.mrf.mxu0
    %v370 = vadd.f32 0.0, %v369
    %371 = vmatmul.f32.gmra.mxu0 %v308
    %v372 = vpop.f32.mrf.mxu0
    %v373 = vadd.f32 0.0, %v372
    %374 = vmatmul.f32.gmra.mxu0 %v311
    %v375 = vpop.f32.mrf.mxu0
    %v376 = vadd.f32 0.0, %v375
    %377 = vmatmul.f32.gmra.mxu0 %v314
    %v378 = vpop.f32.mrf.mxu0
    %v379 = vadd.f32 0.0, %v378
    %380 = vdwg.mxu0
    %v381 = vld [vmem:[%s5] sm:$0x1]
    %v383 = vperm.slane %v381, 0
    %385 = vmatpush.msra.mxu0 %v379
    %386 = vmatpush.msra.mxu0 %v376
    %387 = vmatpush.msra.mxu0 %v373
    %388 = vmatpush.msra.mxu0 %v370
    %389 = vmatpush.msra.mxu0 %v367
    %390 = vmatpush.msra.mxu0 %v364
    %391 = vmatpush.msra.mxu0 %v361
    %392 = vmatpush.msra.mxu0 %v358
    %393 = vmatpush.msra.mxu0 %v355
    %394 = vmatpush.msra.mxu0 %v352
    %395 = vmatpush.msra.mxu0 %v349
    %396 = vmatpush.msra.mxu0 %v346
    %397 = vmatpush.msra.mxu0 %v343
    %398 = vmatpush.msra.mxu0 %v340
    %399 = vmatpush.msra.mxu0 %v337
    %400 = vmatpush.msra.mxu0 %v334
    %401 = vmatmul.f32.gmra.mxu0 %v30
    %v402 = vpop.f32.mrf.mxu0
    %v403 = vadd.f32 %v383, %v402
    %404 = vmatmul.f32.gmra.mxu0 %v31
    %v405 = vpop.f32.mrf.mxu0
    %v406 = vadd.f32 %v383, %v405
    %407 = vmatmul.f32.gmra.mxu0 %v32
    %v408 = vpop.f32.mrf.mxu0
    %v409 = vadd.f32 %v383, %v408
    %410 = vmatmul.f32.gmra.mxu0 %v33
    %v411 = vpop.f32.mrf.mxu0
    %v412 = vadd.f32 %v383, %v411
    %413 = vmatmul.f32.gmra.mxu0 %v34
    %v414 = vpop.f32.mrf.mxu0
    %v415 = vadd.f32 %v383, %v414
    %416 = vmatmul.f32.gmra.mxu0 %v35
    %v417 = vpop.f32.mrf.mxu0
    %v418 = vadd.f32 %v383, %v417
    %419 = vmatmul.f32.gmra.mxu0 %v36
    %v420 = vpop.f32.mrf.mxu0
    %v421 = vadd.f32 %v383, %v420
    %422 = vmatmul.f32.gmra.mxu0 %v37
    %v423 = vpop.f32.mrf.mxu0
    %v424 = vadd.f32 %v383, %v423
    %425 = vmatmul.f32.gmra.mxu0 %v38
    %v426 = vpop.f32.mrf.mxu0
    %v427 = vadd.f32 %v383, %v426
    %428 = vmatmul.f32.gmra.mxu0 %v39
    %v429 = vpop.f32.mrf.mxu0
    %v430 = vadd.f32 %v383, %v429
    %431 = vmatmul.f32.gmra.mxu0 %v40
    %v432 = vpop.f32.mrf.mxu0
    %v433 = vadd.f32 %v383, %v432
    %434 = vmatmul.f32.gmra.mxu0 %v41
    %v435 = vpop.f32.mrf.mxu0
    %v436 = vadd.f32 %v383, %v435
    %437 = vmatmul.f32.gmra.mxu0 %v42
    %v438 = vpop.f32.mrf.mxu0
    %v439 = vadd.f32 %v383, %v438
    %440 = vmatmul.f32.gmra.mxu0 %v43
    %v441 = vpop.f32.mrf.mxu0
    %v442 = vadd.f32 %v383, %v441
    %443 = vmatmul.f32.gmra.mxu0 %v44
    %v444 = vpop.f32.mrf.mxu0
    %v445 = vadd.f32 %v383, %v444
    %446 = vmatmul.f32.gmra.mxu0 %v45
    %v447 = vpop.f32.mrf.mxu0
    %v448 = vadd.f32 %v383, %v447
    %449 = vdwg.mxu0
    %v450 = vmax.f32 %v403, 0.0
    %v451 = vmax.f32 %v406, 0.0
    %v452 = vmax.f32 %v409, 0.0
    %v453 = vmax.f32 %v412, 0.0
    %v454 = vmax.f32 %v415, 0.0
    %v455 = vmax.f32 %v418, 0.0
    %v456 = vmax.f32 %v421, 0.0
    %v457 = vmax.f32 %v424, 0.0
    %v458 = vmax.f32 %v427, 0.0
    %v459 = vmax.f32 %v430, 0.0
    %v460 = vmax.f32 %v433, 0.0
    %v461 = vmax.f32 %v436, 0.0
    %v462 = vmax.f32 %v439, 0.0
    %v463 = vmax.f32 %v442, 0.0
    %v464 = vmax.f32 %v445, 0.0
    %v465 = vmax.f32 %v448, 0.0
    %v466 = vld [vmem:[%s6] sm:$0xff]
    %v467 = vld [vmem:[%s6 + $0x8] sm:$0xff]
    %v468 = vld [vmem:[%s7] sm:$0x1]
    %v470 = vperm.slane %v468, 0
    %v473 = vsel %vm64, %v450, 0
    %v476 = vsel %vm64, %v451, 0
    %v479 = vsel %vm64, %v452, 0
    %v482 = vsel %vm64, %v453, 0
    %v485 = vsel %vm64, %v454, 0
    %v488 = vsel %vm64, %v455, 0
    %v491 = vsel %vm64, %v456, 0
    %v494 = vsel %vm64, %v457, 0
    %v497 = vsel %vm64, %v458, 0
    %v500 = vsel %vm64, %v459, 0
    %v503 = vsel %vm64, %v460, 0
    %v506 = vsel %vm64, %v461, 0
    %v509 = vsel %vm64, %v462, 0
    %v512 = vsel %vm64, %v463, 0
    %v515 = vsel %vm64, %v464, 0
    %v518 = vsel %vm64, %v465, 0
    %520 = vmatpush.msra.mxu0 0.0
    %521 = vmatpush.msra.mxu0 0.0
    %522 = vmatpush.msra.mxu0 0.0
    %523 = vmatpush.msra.mxu0 0.0
    %524 = vmatpush.msra.mxu0 0.0
    %525 = vmatpush.msra.mxu0 0.0
    %526 = vmatpush.msra.mxu0 0.0
    %527 = vmatpush.msra.mxu0 0.0
    %528 = vmatpush.msra.mxu0 0.0
    %529 = vmatpush.msra.mxu0 0.0
    %530 = vmatpush.msra.mxu0 0.0
    %531 = vmatpush.msra.mxu0 0.0
    %532 = vmatpush.msra.mxu0 0.0
    %533 = vmatpush.msra.mxu0 0.0
    %534 = vmatpush.msra.mxu0 %v467
    %535 = vmatpush.msra.mxu0 %v466
    %536 = vmatmul.f32.gmra.mxu0 %v473
    %v537 = vpop.f32.mrf.mxu0
    %v538 = vadd.f32 %v470, %v537
    %539 = vmatmul.f32.gmra.mxu0 %v476
    %v540 = vpop.f32.mrf.mxu0
    %v541 = vadd.f32 %v470, %v540
    %542 = vmatmul.f32.gmra.mxu0 %v479
    %v543 = vpop.f32.mrf.mxu0
    %v544 = vadd.f32 %v470, %v543
    %545 = vmatmul.f32.gmra.mxu0 %v482
    %v546 = vpop.f32.mrf.mxu0
    %v547 = vadd.f32 %v470, %v546
    %548 = vmatmul.f32.gmra.mxu0 %v485
    %v549 = vpop.f32.mrf.mxu0
    %v550 = vadd.f32 %v470, %v549
    %551 = vmatmul.f32.gmra.mxu0 %v488
    %v552 = vpop.f32.mrf.mxu0
    %v553 = vadd.f32 %v470, %v552
    %554 = vmatmul.f32.gmra.mxu0 %v491
    %v555 = vpop.f32.mrf.mxu0
    %v556 = vadd.f32 %v470, %v555
    %557 = vmatmul.f32.gmra.mxu0 %v494
    %v558 = vpop.f32.mrf.mxu0
    %v559 = vadd.f32 %v470, %v558
    %560 = vmatmul.f32.gmra.mxu0 %v497
    %v561 = vpop.f32.mrf.mxu0
    %v562 = vadd.f32 %v470, %v561
    %563 = vmatmul.f32.gmra.mxu0 %v500
    %v564 = vpop.f32.mrf.mxu0
    %v565 = vadd.f32 %v470, %v564
    %566 = vmatmul.f32.gmra.mxu0 %v503
    %v567 = vpop.f32.mrf.mxu0
    %v568 = vadd.f32 %v470, %v567
    %569 = vmatmul.f32.gmra.mxu0 %v506
    %v570 = vpop.f32.mrf.mxu0
    %v571 = vadd.f32 %v470, %v570
    %572 = vmatmul.f32.gmra.mxu0 %v509
    %v573 = vpop.f32.mrf.mxu0
    %v574 = vadd.f32 %v470, %v573
    %575 = vmatmul.f32.gmra.mxu0 %v512
    %v576 = vpop.f32.mrf.mxu0
    %v577 = vadd.f32 %v470, %v576
    %578 = vmatmul.f32.gmra.mxu0 %v515
    %v579 = vpop.f32.mrf.mxu0
    %v580 = vadd.f32 %v470, %v579
    %581 = vmatmul.f32.gmra.mxu0 %v518
    %v582 = vpop.f32.mrf.mxu0
    %v583 = vadd.f32 %v470, %v582
    %584 = vdwg.mxu0
    %585 = vst [vmem:[#allocation2] sm:$0xff] %v538
    %586 = vst [vmem:[#allocation2 + $0x8] sm:$0xff] %v541
    %587 = vst [vmem:[#allocation2 + $0x10] sm:$0xff] %v544
    %588 = vst [vmem:[#allocation2 + $0x18] sm:$0xff] %v547
    %589 = vst [vmem:[#allocation2 + $0x20] sm:$0xff] %v550
    %590 = vst [vmem:[#allocation2 + $0x28] sm:$0xff] %v553
    %591 = vst [vmem:[#allocation2 + $0x30] sm:$0xff] %v556
    %592 = vst [vmem:[#allocation2 + $0x38] sm:$0xff] %v559
    %593 = vst [vmem:[#allocation2 + $0x40] sm:$0xff] %v562
    %594 = vst [vmem:[#allocation2 + $0x48] sm:$0xff] %v565
    %595 = vst [vmem:[#allocation2 + $0x50] sm:$0xff] %v568
    %596 = vst [vmem:[#allocation2 + $0x58] sm:$0xff] %v571
    %597 = vst [vmem:[#allocation2 + $0x60] sm:$0xff] %v574
    %598 = vst [vmem:[#allocation2 + $0x68] sm:$0xff] %v577
    %599 = vst [vmem:[#allocation2 + $0x70] sm:$0xff] %v580
    %600 = vst [vmem:[#allocation2 + $0x78] sm:$0xff] %v583
    // Predicated region
    $region34: #{tpu_custom_call.1} parent=1 // pred_check
      _
    $region35: #{tpu_custom_call.1} parent=1 // pred_check_branch
      %602 = sbr.rel (0) target = $region37
    $region36: #{tpu_custom_call.1} parent=1 // pred_region
      %604 = vsyncadd [#allocation3], 0
      %s605 = sshll.u32 [#allocation2], 4
      %s606 = int_to_ptr.vmem [resolvable:$true] %s605
      %s607 = sshll.u32 %s8, 4
      %s608 = int_to_ptr.hbm [resolvable:$true] %s607
      %613 = dma.vmem_to_hbm [thread:$0]  %s606, 2048, %s608, [#allocation3], 128, 128, 8
    $region37: #{tpu_custom_call.1} parent=1 // pred_fallthru
      _
    // Predicated region
    $region38: #{tpu_custom_call.1} parent=1 // pred_check
      _
    $region39: #{tpu_custom_call.1} parent=1 // pred_check_branch
      %615 = sbr.rel (0) target = $region41
    $region40: #{tpu_custom_call.1} parent=1 // pred_region
      %617 = dma.done [#allocation3], 2048
    $region41: #{tpu_custom_call.1} parent=1 // pred_fallthru
      _
    %618 = vsyncpa [#allocation3], 1

</llo_original>
